<compile_context>
chip_gen: v5e
topology: v5e:2x2
jax: 0.10.0
libtpu: 0.0.40
codegen_flags: <defaults>
</compile_context>

<pallas_src>
import jax
import jax.numpy as jnp
from jax.experimental import pallas as pl
from jax.experimental.pallas import tpu as pltpu

EPS = 1e-6


def _round_up(n, m):
    return ((n + m - 1) // m) * m


def _vmem_capacity_bytes():
    try:
        return int(pltpu.get_tpu_info().vmem_capacity_bytes)
    except Exception:
        return 64 << 20  # conservative fallback (v7x per-core VMEM)


def _pick_row_tile_and_vmem(rows, feat, io_itemsize, w_itemsize, requested_rt):
    """Largest row tile that fits a per-generation VMEM budget (+ honest limit)."""
    cap = _vmem_capacity_bytes()
    budget = int(cap * 0.75)  # ~25% headroom for Mosaic internal scratch

    # Resident, single-buffered operands: W (bf16) + the small (1,F) vectors.
    resident = feat * feat * w_itemsize + 8 * feat * 4
    # Per tile row: double-buffered x + out tiles in the I/O dtype, plus the
    # f32 temporaries the kernel materialises (y/s/centered/normalized).
    per_row = 4 * feat * io_itemsize + 4 * feat * 4

    row_align = 16 if io_itemsize < 4 else 8
    rows_aligned = _round_up(rows, row_align)
    max_rt = (budget - resident) // per_row
    rt = max(row_align, min(requested_rt, rows_aligned, max_rt))
    rt = max(row_align, (rt // row_align) * row_align)

    vmem_limit = resident + rt * per_row + (2 << 20)
    vmem_limit = int(min(max(vmem_limit, 32 << 20), cap))
    return rt, vmem_limit


def _fused_residual_ln_kernel(x_ref, w_ref, b_ref, alpha_ref, bias_ref, o_ref):
    # x_ref: (rt, F) pipelined tile.  w_ref: (F, F) resident (bf16).
    # b_ref / alpha_ref / bias_ref: (1, F) resident.
    x = x_ref[...]

    # Fused sublayer Linear on the MXU: bf16 x bf16 -> f32 accumulation.
    y = jnp.dot(x.astype(w_ref.dtype), w_ref[...],
                preferred_element_type=jnp.float32)
    y = y + b_ref[...].astype(jnp.float32)

    # Residual add + LayerNorm math in f32.
    s = x.astype(jnp.float32) + y
    f = s.shape[-1]
    mean = jnp.mean(s, axis=-1, keepdims=True)
    centered = s - mean
    # torch.std uses the unbiased estimator (divide by N-1).
    var = jnp.sum(centered * centered, axis=-1, keepdims=True) / (f - 1)
    std = jnp.sqrt(var)
    # torch module divides by (std + eps), NOT sqrt(var + eps).
    # Exact reciprocal (approx=False -> not the EUP fast path); it is only
    # (rt, 1) elements, the following rt*F multiply dominates either way.
    inv = pl.reciprocal(std + EPS, approx=False)
    out = alpha_ref[...].astype(jnp.float32) * (centered * inv)
    out = out + bias_ref[...].astype(jnp.float32)
    o_ref[...] = out.astype(o_ref.dtype)


def residual_connection(x, w, b, alpha, bias, *, row_tile=512,
                        matmul_dtype=jnp.bfloat16):
    """ResidualConnection forward: LayerNorm(x + (x @ w + b)).

    x: [B, S, F] (any float dtype; I/O stays in that dtype)
    w: [F, F], b/alpha/bias: [F]
    """
    B, S, F = x.shape
    rows = B * S
    dtype = x.dtype
    io_itemsize = jnp.dtype(dtype).itemsize

    # W is cast once here so the VMEM-resident copy is half-size and the MXU
    # runs native bf16 (single-pass) instead of emulated f32.
    w2 = w.reshape(F, F).astype(matmul_dtype)
    b2 = b.reshape(1, F).astype(jnp.float32)
    a2 = alpha.reshape(1, F).astype(jnp.float32)
    bias2 = bias.reshape(1, F).astype(jnp.float32)

    rt, vmem_limit = _pick_row_tile_and_vmem(
        rows, F, io_itemsize, w2.dtype.itemsize, row_tile)

    x2 = x.reshape(rows, F)          # metadata-only reshape, no HBM pass
    grid = (pl.cdiv(rows, rt),)      # ragged last block handled by Pallas

    vmem = pltpu.MemorySpace.VMEM
    out = pl.pallas_call(
        _fused_residual_ln_kernel,
        out_shape=jax.ShapeDtypeStruct((rows, F), dtype),
        grid_spec=pltpu.PrefetchScalarGridSpec(
            num_scalar_prefetch=0,
            grid=grid,
            in_specs=[
                pl.BlockSpec((rt, F), lambda i: (i, 0)),  # x tile (pipelined)
                pl.BlockSpec(memory_space=vmem),          # W: resident, 1 copy
                pl.BlockSpec(memory_space=vmem),          # sublayer bias
                pl.BlockSpec(memory_space=vmem),          # LN alpha
                pl.BlockSpec(memory_space=vmem),          # LN bias
            ],
            out_specs=pl.BlockSpec((rt, F), lambda i: (i, 0)),
        ),
        compiler_params=pltpu.CompilerParams(
            # Rows are embarrassingly parallel -> megacore-shardable on v7x.
            # If an xprof trace shows one TC idle, switch to pltpu.CORE_PARALLEL.
            dimension_semantics=("parallel",),
            vmem_limit_bytes=vmem_limit,
        ),
    )(x2, w2, b2, a2, bias2)

    return out.reshape(B, S, F)


if __name__ == "__main__":
    B, S, F = 2, 8, 128   # F multiple of 128 -> lane-dense blocks/stores

    key = jax.random.PRNGKey(0)
    kx, kw, kb = jax.random.split(key, 3)

    x = jax.random.normal(kx, (B, S, F), dtype=jnp.float32)

    # Deterministic "sublayer": Linear(F -> F), fused into the kernel.
    w = jax.random.normal(kw, (F, F), dtype=jnp.float32) * (1.0 / jnp.sqrt(F))
    b = jax.random.normal(kb, (F,), dtype=jnp.float32) * 0.01

    # LayerNormalization params: alpha = ones, bias = zeros (as in __init__).
    alpha = jnp.ones((F,), dtype=jnp.float32)
    bias = jnp.zeros((F,), dtype=jnp.float32)

    out = residual_connection(x, w, b, alpha, bias)
    out = jax.block_until_ready(out)

    # Pure-JAX reference with torch-exact semantics (unbiased std, /(std+eps)),
    # using the same bf16 rounding for the matmul inputs as the kernel.
    xb = x.astype(jnp.bfloat16)
    wb = w.astype(jnp.bfloat16)
    sub = jnp.dot(xb.reshape(-1, F), wb,
                  preferred_element_type=jnp.float32).reshape(B, S, F) + b
    s = x + sub
    mean = s.mean(-1, keepdims=True)
    std = jnp.sqrt(((s - mean) ** 2).sum(-1, keepdims=True) / (F - 1))
    ref = alpha * (s - mean) / (std + EPS) + bias
    assert jnp.allclose(out, ref, atol=5e-3, rtol=5e-3), "mismatch vs reference"

    print("KERNEL_OK")
</pallas_src>

<mosaic_0001>
module attributes {stable_mosaic.version = 11 : i64} {
  func.func @_fused_residual_ln_kernel(%arg0: i32, %arg1: memref<16x128xf32, #tpu.memory_space<vmem>>, %arg2: memref<128x128xbf16, #tpu.memory_space<vmem>>, %arg3: memref<1x128xf32, #tpu.memory_space<vmem>>, %arg4: memref<1x128xf32, #tpu.memory_space<vmem>>, %arg5: memref<1x128xf32, #tpu.memory_space<vmem>>, %arg6: memref<16x128xf32, #tpu.memory_space<vmem>>) attributes {dimension_semantics = [#tpu.dimension_semantics<parallel>], iteration_bounds = array<i64: 1>, scalar_prefetch = 0 : i64, scratch_operands = 0 : i64, tpu.core_type = #tpu.core_type<tc>, window_params = [{transform_indices = @transform_0, window_bounds = array<i64: 16, 128>}, {pipeline_mode = #tpu.pipeline_mode<synchronous>, transform_indices = @transform_1, window_bounds = array<i64: 128, 128>}, {pipeline_mode = #tpu.pipeline_mode<synchronous>, transform_indices = @transform_2, window_bounds = array<i64: 1, 128>}, {pipeline_mode = #tpu.pipeline_mode<synchronous>, transform_indices = @transform_3, window_bounds = array<i64: 1, 128>}, {pipeline_mode = #tpu.pipeline_mode<synchronous>, transform_indices = @transform_4, window_bounds = array<i64: 1, 128>}, {transform_indices = @transform_5, window_bounds = array<i64: 16, 128>}]} {
    %c0 = arith.constant 0 : index
    %c0_0 = arith.constant 0 : index
    %0 = vector.load %arg1[%c0, %c0_0] : memref<16x128xf32, #tpu.memory_space<vmem>>, vector<16x128xf32>
    %1 = arith.truncf %0 : vector<16x128xf32> to vector<16x128xbf16>
    %c0_1 = arith.constant 0 : index
    %c0_2 = arith.constant 0 : index
    %2 = vector.load %arg2[%c0_1, %c0_2] : memref<128x128xbf16, #tpu.memory_space<vmem>>, vector<128x128xbf16>
    %cst = arith.constant dense<0.000000e+00> : vector<16x128xf32>
    %3 = tpu.matmul %1, %2, %cst {dimension_numbers = #tpu.dot_dimension_numbers<[1], [0], [0], [1], [0, 0, 1, 1], [], []>} : vector<16x128xbf16>, vector<128x128xbf16>, vector<16x128xf32> -> vector<16x128xf32>
    %c0_3 = arith.constant 0 : index
    %c0_4 = arith.constant 0 : index
    %4 = vector.load %arg3[%c0_3, %c0_4] : memref<1x128xf32, #tpu.memory_space<vmem>>, vector<1x128xf32>
    %5 = vector.broadcast %4 : vector<1x128xf32> to vector<16x128xf32>
    %6 = arith.addf %3, %5 : vector<16x128xf32>
    %7 = arith.addf %0, %6 : vector<16x128xf32>
    %cst_5 = arith.constant dense<0.000000e+00> : vector<16xf32>
    %8 = vector.multi_reduction <add>, %7, %cst_5 [1] : vector<16x128xf32> to vector<16xf32>
    %9 = vector.shape_cast %8 : vector<16xf32> to vector<16x1xf32>
    %cst_6 = arith.constant 1.280000e+02 : f32
    %10 = vector.broadcast %cst_6 : f32 to vector<16x1xf32>
    %11 = arith.divf %9, %10 : vector<16x1xf32>
    %12 = vector.broadcast %11 : vector<16x1xf32> to vector<16x128xf32>
    %13 = arith.subf %7, %12 : vector<16x128xf32>
    %14 = arith.mulf %13, %13 : vector<16x128xf32>
    %cst_7 = arith.constant dense<0.000000e+00> : vector<16xf32>
    %15 = vector.multi_reduction <add>, %14, %cst_7 [1] : vector<16x128xf32> to vector<16xf32>
    %16 = vector.shape_cast %15 : vector<16xf32> to vector<16x1xf32>
    %cst_8 = arith.constant 1.270000e+02 : f32
    %17 = vector.broadcast %cst_8 : f32 to vector<16x1xf32>
    %18 = arith.divf %16, %17 : vector<16x1xf32>
    %19 = math.sqrt %18 : vector<16x1xf32>
    %cst_9 = arith.constant 9.99999997E-7 : f32
    %20 = vector.broadcast %cst_9 : f32 to vector<16x1xf32>
    %21 = arith.addf %19, %20 : vector<16x1xf32>
    %22 = tpu.reciprocal %21 : vector<16x1xf32> -> vector<16x1xf32>
    %c0_10 = arith.constant 0 : index
    %c0_11 = arith.constant 0 : index
    %23 = vector.load %arg4[%c0_10, %c0_11] : memref<1x128xf32, #tpu.memory_space<vmem>>, vector<1x128xf32>
    %24 = vector.broadcast %22 : vector<16x1xf32> to vector<16x128xf32>
    %25 = arith.mulf %13, %24 : vector<16x128xf32>
    %26 = vector.broadcast %23 : vector<1x128xf32> to vector<16x128xf32>
    %27 = arith.mulf %26, %25 : vector<16x128xf32>
    %c0_12 = arith.constant 0 : index
    %c0_13 = arith.constant 0 : index
    %28 = vector.load %arg5[%c0_12, %c0_13] : memref<1x128xf32, #tpu.memory_space<vmem>>, vector<1x128xf32>
    %29 = vector.broadcast %28 : vector<1x128xf32> to vector<16x128xf32>
    %30 = arith.addf %27, %29 : vector<16x128xf32>
    %c0_14 = arith.constant 0 : index
    %c0_15 = arith.constant 0 : index
    %31 = vector.load %arg6[%c0_14, %c0_15] : memref<16x128xf32, #tpu.memory_space<vmem>>, vector<16x128xf32>
    tpu.vector_store %arg6[%c0_14, %c0_15], %30 {strides = array<i32>} : memref<16x128xf32, #tpu.memory_space<vmem>>, vector<16x128xf32>,
    return
  }
  func.func @transform_0(%arg0: i32) -> (i32, i32) {
    %c0_i32 = arith.constant 0 : i32
    %c0_i32_0 = arith.constant 0 : i32
    return %arg0, %c0_i32 : i32, i32
  }
  func.func @transform_1(%arg0: i32) -> (i32, i32) {
    %c0_i32 = arith.constant 0 : i32
    %c0_i32_0 = arith.constant 0 : i32
    %c0_i32_1 = arith.constant 0 : i32
    return %c0_i32, %c0_i32_0 : i32, i32
  }
  func.func @transform_2(%arg0: i32) -> (i32, i32) {
    %c0_i32 = arith.constant 0 : i32
    %c0_i32_0 = arith.constant 0 : i32
    %c0_i32_1 = arith.constant 0 : i32
    return %c0_i32, %c0_i32_0 : i32, i32
  }
  func.func @transform_3(%arg0: i32) -> (i32, i32) {
    %c0_i32 = arith.constant 0 : i32
    %c0_i32_0 = arith.constant 0 : i32
    %c0_i32_1 = arith.constant 0 : i32
    return %c0_i32, %c0_i32_0 : i32, i32
  }
  func.func @transform_4(%arg0: i32) -> (i32, i32) {
    %c0_i32 = arith.constant 0 : i32
    %c0_i32_0 = arith.constant 0 : i32
    %c0_i32_1 = arith.constant 0 : i32
    return %c0_i32, %c0_i32_0 : i32, i32
  }
  func.func @transform_5(%arg0: i32) -> (i32, i32) {
    %c0_i32 = arith.constant 0 : i32
    %c0_i32_0 = arith.constant 0 : i32
    return %arg0, %c0_i32 : i32, i32
  }
}

</mosaic_0001>

<llo_original>
// kernel: tpu_custom_call.1
$region0: #{tpu_custom_call.1}
  #allocation0 [shape = 'u32[]', space=smem, size = 0x4, offset = 0x4, fixed_abs, tag = 'smem constant byte address 0x4 - core index']
  #allocation1 [shape = 'u32[72,128]{1,0:T(1,128)}', space=vmem, size = 0x9000, scoped, tag = 'internal scratch']
  %s0 = inlined_call_operand.hbm [shape: f32[16,128], index: 0, kind: input, shape index: {}]
  %s1 = inlined_call_operand.hbm [shape: bf16[128,128], index: 1, kind: input, shape index: {}]
  %s2 = inlined_call_operand.vmem [shape: f32[1,128], index: 2, kind: input, shape index: {}]
  %s3 = inlined_call_operand.vmem [shape: f32[1,128], index: 3, kind: input, shape index: {}]
  %s4 = inlined_call_operand.vmem [shape: f32[1,128], index: 4, kind: input, shape index: {}]
  %s5 = inlined_call_operand.hbm [shape: f32[16,128], index: 5, kind: output, shape index: {}]
  %s6 = sld [smem:[#allocation0]]
  $region38: #{tpu_custom_call.1} parent=0
    _
  %s8 = ssub.s32 1, %s6
  %s9 = scalar_select 0, %s8, %s6
  $region1: #{tpu_custom_call.1} parent=0
    #allocation2 [shape = 'u8[8192]{0}', space=vmem, size = 0x2000, scoped, tag = 'input window, operand 0, single buffered']
    #allocation3 [shape = 's32[1]{0}', space=sflag, size = 0x4, scoped, tag = 'scoped memory for tpu_custom_call.1']
    #allocation4 [shape = 's32[1]{0}', space=sflag, size = 0x4, scoped, tag = 'scoped memory for tpu_custom_call.1']
    #allocation5 [shape = 'u8[32768]{0}', space=vmem, size = 0x8000, scoped, tag = 'input window, operand 1, single buffered']
    #allocation6 [shape = 's32[1]{0}', space=sflag, size = 0x4, scoped, tag = 'scoped memory for tpu_custom_call.1']
    #allocation7 [shape = 'u8[8192]{0}', space=vmem, size = 0x2000, scoped, tag = 'output window, operand 0, single buffered']
    %10 = vsyncpa [#allocation3], 0
    %11 = vsyncpa [#allocation6], 0
    %12 = vsyncpa [#allocation4], 0
    // Predicated region
    $region2: #{tpu_custom_call.1} parent=1 // pred_check
      _
    $region3: #{tpu_custom_call.1} parent=1 // pred_check_branch
      %14 = sbr.rel (0) target = $region5
    $region4: #{tpu_custom_call.1} parent=1 // pred_region
      %16 = vsyncadd [#allocation3], 0
      %s17 = sshll.u32 %s0, 4
      %s18 = int_to_ptr.hbm [resolvable:$true] %s17
      %s19 = sshll.u32 [#allocation2], 4
      %s20 = int_to_ptr.vmem [resolvable:$true] %s19
      %25 = dma.hbm_to_vmem [thread:$0]  %s18, 256, %s20, [#allocation3], 128, 128, 8
    $region5: #{tpu_custom_call.1} parent=1 // pred_fallthru
      _
    // Predicated region
    $region6: #{tpu_custom_call.1} parent=1 // pred_check
      _
    $region7: #{tpu_custom_call.1} parent=1 // pred_check_branch
      %27 = sbr.rel (0) target = $region9
    $region8: #{tpu_custom_call.1} parent=1 // pred_region
      %29 = vsyncadd [#allocation6], 0
      %s30 = sshll.u32 %s1, 4
      %s31 = int_to_ptr.hbm [resolvable:$true] %s30
      %s32 = sshll.u32 [#allocation5], 4
      %s33 = int_to_ptr.vmem [resolvable:$true] %s32
      %38 = dma.hbm_to_vmem [thread:$0]  %s31, 1024, %s33, [#allocation6], 64, 64, 4
    $region9: #{tpu_custom_call.1} parent=1 // pred_fallthru
      _
    // Predicated region
    $region10: #{tpu_custom_call.1} parent=1 // pred_check
      _
    $region11: #{tpu_custom_call.1} parent=1 // pred_check_branch
      %40 = sbr.rel (0) target = $region13
    $region12: #{tpu_custom_call.1} parent=1 // pred_region
      _
    $region13: #{tpu_custom_call.1} parent=1 // pred_fallthru
      _
    // Predicated region
    $region14: #{tpu_custom_call.1} parent=1 // pred_check
      _
    $region15: #{tpu_custom_call.1} parent=1 // pred_check_branch
      %42 = sbr.rel (0) target = $region17
    $region16: #{tpu_custom_call.1} parent=1 // pred_region
      _
    $region17: #{tpu_custom_call.1} parent=1 // pred_fallthru
      _
    // Predicated region
    $region18: #{tpu_custom_call.1} parent=1 // pred_check
      _
    $region19: #{tpu_custom_call.1} parent=1 // pred_check_branch
      %44 = sbr.rel (0) target = $region21
    $region20: #{tpu_custom_call.1} parent=1 // pred_region
      _
    $region21: #{tpu_custom_call.1} parent=1 // pred_fallthru
      _
    // Predicated region
    $region22: #{tpu_custom_call.1} parent=1 // pred_check
      _
    $region23: #{tpu_custom_call.1} parent=1 // pred_check_branch
      %46 = sbr.rel (0) target = $region25
    $region24: #{tpu_custom_call.1} parent=1 // pred_region
      %48 = dma.done [#allocation3], 256
    $region25: #{tpu_custom_call.1} parent=1 // pred_fallthru
      _
    // Predicated region
    $region26: #{tpu_custom_call.1} parent=1 // pred_check
      _
    $region27: #{tpu_custom_call.1} parent=1 // pred_check_branch
      %50 = sbr.rel (0) target = $region29
    $region28: #{tpu_custom_call.1} parent=1 // pred_region
      %52 = dma.done [#allocation6], 1024
    $region29: #{tpu_custom_call.1} parent=1 // pred_fallthru
      _
    %v53 = vld [vmem:[#allocation2] sm:$0xff]
    %v54 = vld [vmem:[#allocation2 + $0x8] sm:$0xff]
    %v55 = vpack.c.bf16 %v54, %v53
    %v56 = vld [vmem:[#allocation5] sm:$0xf]
    %v57 = vld [vmem:[#allocation5 + $0x4] sm:$0xf]
    %v58 = vld [vmem:[#allocation5 + $0x8] sm:$0xf]
    %v59 = vld [vmem:[#allocation5 + $0xc] sm:$0xf]
    %v60 = vld [vmem:[#allocation5 + $0x10] sm:$0xf]
    %v61 = vld [vmem:[#allocation5 + $0x14] sm:$0xf]
    %v62 = vld [vmem:[#allocation5 + $0x18] sm:$0xf]
    %v63 = vld [vmem:[#allocation5 + $0x1c] sm:$0xf]
    %v64 = vld [vmem:[#allocation5 + $0x20] sm:$0xf]
    %v65 = vld [vmem:[#allocation5 + $0x24] sm:$0xf]
    %v66 = vld [vmem:[#allocation5 + $0x28] sm:$0xf]
    %v67 = vld [vmem:[#allocation5 + $0x2c] sm:$0xf]
    %v68 = vld [vmem:[#allocation5 + $0x30] sm:$0xf]
    %v69 = vld [vmem:[#allocation5 + $0x34] sm:$0xf]
    %v70 = vld [vmem:[#allocation5 + $0x38] sm:$0xf]
    %v71 = vld [vmem:[#allocation5 + $0x3c] sm:$0xf]
    %v72 = vld [vmem:[%s2] sm:$0x1]
    %v74 = vperm.slane %v72, 0
    %v92 = vunpack.c.l.b16 %v56
    %v93 = vunpack.c.l.b16 %v57
    %v94 = vunpack.c.l.b16 %v58
    %v95 = vunpack.c.l.b16 %v59
    %v96 = vunpack.c.l.b16 %v60
    %v97 = vunpack.c.l.b16 %v61
    %v98 = vunpack.c.l.b16 %v62
    %v99 = vunpack.c.l.b16 %v63
    %v100 = vunpack.c.l.b16 %v64
    %v101 = vunpack.c.l.b16 %v65
    %v102 = vunpack.c.l.b16 %v66
    %v103 = vunpack.c.l.b16 %v67
    %v104 = vunpack.c.l.b16 %v68
    %v105 = vunpack.c.l.b16 %v69
    %v106 = vunpack.c.l.b16 %v70
    %v107 = vunpack.c.l.b16 %v71
    %v108 = vpack.c.b16 %v93, %v92
    %v109 = vpack.c.b16 %v95, %v94
    %v110 = vpack.c.b16 %v97, %v96
    %v111 = vpack.c.b16 %v99, %v98
    %v112 = vpack.c.b16 %v101, %v100
    %v113 = vpack.c.b16 %v103, %v102
    %v114 = vpack.c.b16 %v105, %v104
    %v115 = vpack.c.b16 %v107, %v106
    %124 = vmatpush.bf16.msra.mxu0 %v115
    %125 = vmatpush.bf16.msra.mxu0 %v114
    %126 = vmatpush.bf16.msra.mxu0 %v113
    %127 = vmatpush.bf16.msra.mxu0 %v112
    %128 = vmatpush.bf16.msra.mxu0 %v111
    %129 = vmatpush.bf16.msra.mxu0 %v110
    %130 = vmatpush.bf16.msra.mxu0 %v109
    %131 = vmatpush.bf16.msra.mxu0 %v108
    %132 = vmatmul.bf16.gmra.mxu0 %v55
    %v133 = vpop.f32.mrf.mxu0
    %v134 = vadd.f32 %v74, %v133
    %v135 = vpop.f32.mrf.mxu0
    %v136 = vadd.f32 %v74, %v135
    %137 = vdwg.mxu0
    %v138 = vadd.f32 %v53, %v134
    %v139 = vadd.f32 %v54, %v136
    %140 = vadd.xlane.f32.xlu0 %v138
    %v141 = vpop.xlane.xlu0 %140
    %142 = vadd.xlane.f32.xlu0 %v139
    %v143 = vpop.xlane.xlu0 %142
    %v144 = vrcp.pop 128.0
    %v145 = vmul.f32 128.0, %v144
    %v146 = vsub.f32 1.0, %v145
    %v147 = vmul.f32 %v144, %v146
    %v148 = vadd.f32 %v144, %v147
    %vm149 = vweird.f32 %v144
    %v150 = vsel %vm149, %v144, %v148
    %v151 = vmul.f32 %v141, %v150
    %v152 = vmul.f32 %v143, %v150
    %v153 = vsub.f32 %v138, %v151
    %v154 = vsub.f32 %v139, %v152
    %v155 = vmul.f32 %v153, %v153
    %v156 = vmul.f32 %v154, %v154
    %157 = vadd.xlane.f32.xlu0 %v155
    %v158 = vpop.xlane.xlu0 %157
    %159 = vadd.xlane.f32.xlu0 %v156
    %v160 = vpop.xlane.xlu0 %159
    %v161 = vrcp.pop 127.0
    %v162 = vmul.f32 127.0, %v161
    %v163 = vsub.f32 1.0, %v162
    %v164 = vmul.f32 %v161, %v163
    %v165 = vadd.f32 %v161, %v164
    %vm166 = vweird.f32 %v161
    %v167 = vsel %vm166, %v161, %v165
    %v168 = vmul.f32 %v158, %v167
    %v169 = vmul.f32 %v160, %v167
    %v170 = vrsqrt.pop %v168
    %v171 = vmul.f32 %v170, %v168
    %v172 = vmul.f32 %v171, %v170
    %v173 = vmul.f32 0.5, %v172
    %v174 = vsub.f32 1.5, %v173
    %v175 = vmul.f32 %v170, %v174
    %v176 = vmul.f32 %v168, %v175
    %vm177 = vcmp.eq.f32.partialorder %v168, inf
    %v178 = vsel %vm177, %v168, %v176
    %vm179 = vcmp.eq.f32.partialorder %v168, 0.0
    %v180 = vand.u32 %v168, 2147483648
    %v181 = vsel %vm179, %v180, %v178
    %v182 = vrsqrt.pop %v169
    %v183 = vmul.f32 %v182, %v169
    %v184 = vmul.f32 %v183, %v182
    %v185 = vmul.f32 0.5, %v184
    %v186 = vsub.f32 1.5, %v185
    %v187 = vmul.f32 %v182, %v186
    %v188 = vmul.f32 %v169, %v187
    %vm189 = vcmp.eq.f32.partialorder %v169, inf
    %v190 = vsel %vm189, %v169, %v188
    %vm191 = vcmp.eq.f32.partialorder %v169, 0.0
    %v192 = vand.u32 %v169, 2147483648
    %v193 = vsel %vm191, %v192, %v190
    %v194 = vadd.f32 %v181, 1e-06
    %v195 = vadd.f32 %v193, 1e-06
    %v196 = vrcp.pop %v194
    %v197 = vmul.f32 %v194, %v196
    %v198 = vsub.f32 1.0, %v197
    %v199 = vmul.f32 %v196, %v198
    %v200 = vadd.f32 %v196, %v199
    %vm201 = vweird.f32 %v194
    %vm202 = vweird.f32 %v196
    %vm203 = vmor %vm201, %vm202
    %v204 = vsel %vm203, %v196, %v200
    %v205 = vand.u32 2147483647, %v194
    %vm206 = vcmp.eq.f32.partialorder %v205, 8.507059e+37
    %v207 = vand.u32 %v194, 2147483648
    %v208 = vor.u32 1.1754944e-38, %v207
    %v209 = vsel %vm206, %v208, %v204
    %v210 = vrcp.pop %v195
    %v211 = vmul.f32 %v195, %v210
    %v212 = vsub.f32 1.0, %v211
    %v213 = vmul.f32 %v210, %v212
    %v214 = vadd.f32 %v210, %v213
    %vm215 = vweird.f32 %v195
    %vm216 = vweird.f32 %v210
    %vm217 = vmor %vm215, %vm216
    %v218 = vsel %vm217, %v210, %v214
    %v219 = vand.u32 2147483647, %v195
    %vm220 = vcmp.eq.f32.partialorder %v219, 8.507059e+37
    %v221 = vand.u32 %v195, 2147483648
    %v222 = vor.u32 1.1754944e-38, %v221
    %v223 = vsel %vm220, %v222, %v218
    %v224 = vld [vmem:[%s3] sm:$0x1]
    %v225 = vmul.f32 %v153, %v209
    %v226 = vmul.f32 %v154, %v223
    %v228 = vperm.slane %v224, 0
    %v230 = vmul.f32 %v228, %v225
    %v231 = vmul.f32 %v228, %v226
    %v232 = vld [vmem:[%s4] sm:$0x1]
    %v234 = vperm.slane %v232, 0
    %v236 = vadd.f32 %v230, %v234
    %v237 = vadd.f32 %v231, %v234
    %238 = vst [vmem:[#allocation7] sm:$0xff] %v236
    %239 = vst [vmem:[#allocation7 + $0x8] sm:$0xff] %v237
    // Predicated region
    $region30: #{tpu_custom_call.1} parent=1 // pred_check
      _
    $region31: #{tpu_custom_call.1} parent=1 // pred_check_branch
      %241 = sbr.rel (0) target = $region33
    $region32: #{tpu_custom_call.1} parent=1 // pred_region
      %243 = vsyncadd [#allocation4], 0
      %s244 = sshll.u32 [#allocation7], 4
      %s245 = int_to_ptr.vmem [resolvable:$true] %s244
      %s246 = sshll.u32 %s5, 4
      %s247 = int_to_ptr.hbm [resolvable:$true] %s246
      %252 = dma.vmem_to_hbm [thread:$0]  %s245, 256, %s247, [#allocation4], 128, 128, 8
    $region33: #{tpu_custom_call.1} parent=1 // pred_fallthru
      _
    // Predicated region
    $region34: #{tpu_custom_call.1} parent=1 // pred_check
      _
    $region35: #{tpu_custom_call.1} parent=1 // pred_check_branch
      %254 = sbr.rel (0) target = $region37
    $region36: #{tpu_custom_call.1} parent=1 // pred_region
      %256 = dma.done [#allocation4], 256
    $region37: #{tpu_custom_call.1} parent=1 // pred_fallthru
      _
    %257 = vsyncpa [#allocation3], 1
    %258 = vsyncpa [#allocation6], 1
    %259 = vsyncpa [#allocation4], 1

</llo_original>
